<compile_context>
chip_gen: v6e
topology: v6e:2x2x1
jax: 0.10.0
libtpu: 0.0.40
codegen_flags: <defaults>
</compile_context>

<pallas_src>
import functools
import math

import jax
import jax.numpy as jnp
from jax import lax
from jax.experimental import pallas as pl
from jax.experimental.pallas import tpu as pltpu


def _mha_kernel(q_ref, k_ref, v_ref, wot_ref, bo_ref, out_ref, ctx_ref, *,
                n_heads, head_dim):
    """Per-(batch, q-tile) fused attention + output projection.

    q_ref  : (1, tq, E) bf16  pre-projected, pre-scaled queries
    k_ref  : (1, S,  E) bf16  pre-projected keys
    v_ref  : (1, S,  E) bf16  pre-projected values
    wot_ref: (E, E)     bf16  Wo^T  (out = concat @ Wo^T + bo)
    bo_ref : (1, E)     f32
    ctx_ref: (tq, E)    bf16  VMEM scratch holding the per-head concat
    """
    f32 = jnp.float32
    bf16 = jnp.bfloat16

    for h in range(n_heads):
        lo = h * head_dim
        hi = lo + head_dim
        # Static ref slices (column-slab loads), not value-level lane slices.
        qh = q_ref[0, :, lo:hi]          # (tq, d) bf16, already * 1/sqrt(d)
        kh = k_ref[0, :, lo:hi]          # (S,  d) bf16
        vh = v_ref[0, :, lo:hi]          # (S,  d) bf16

        # scores = q @ k^T, contracting the last dims directly (no transpose).
        s = lax.dot_general(qh, kh, (((1,), (1,)), ((), ())),
                            preferred_element_type=f32)            # (tq, S)

        # mask=None path: plain softmax over keys, f32 math.  The approximate
        # EUP reciprocal has ~2^-12 relative error — well inside the bf16
        # pipeline tolerance (validated against the f32-softmax reference).
        m = jnp.max(s, axis=-1, keepdims=True)
        e = jnp.exp(s - m)
        # TODO(synk): on v6e/v7x the exp could run in bf16 for EUP throughput.
        p = e * pl.reciprocal(jnp.sum(e, axis=-1, keepdims=True), approx=True)

        ctx = jnp.dot(p.astype(bf16), vh, preferred_element_type=f32)  # (tq, d)
        ctx_ref[:, lo:hi] = ctx.astype(bf16)

    # Single (tq,E) @ (E,E) output projection + bias; the only output store is
    # one full-width lane-dense (tq, E) write.
    out = jnp.dot(ctx_ref[...], wot_ref[...], preferred_element_type=f32)
    out_ref[0] = (out + bo_ref[...]).astype(out_ref.dtype)


def _single_buffered(block_shape, index_map):
    """BlockSpec requesting single buffering for a (nearly) grid-constant
    input, with a graceful fallback if pipeline_mode/pl.Buffered is absent."""
    buffered = getattr(pl, "Buffered", None)
    if buffered is not None:
        try:
            return pl.BlockSpec(block_shape, index_map,
                                pipeline_mode=buffered(1))
        except TypeError:
            pass
    return pl.BlockSpec(block_shape, index_map)


def _pick_q_tile(sq):
    # Prefer an exact divisor (no padding).  256 feeds the 256-wide MXU on
    # v6e/v7x and stays inside the v7x 64 MiB VMEM budget (v6e could use 512).
    for t in (256, 128):
        if sq % t == 0:
            return t
    for t in (256, 128):
        if sq >= t:
            return t
    # Tiny sequences: one sublane-aligned tile.
    return ((sq + 7) // 8) * 8


def multi_head_attention(key, query, value, wk, wq, wv, wo, bo, *, n_heads):
    """Pallas implementation of MultiHeadAttention.forward (mask=None, eval)."""
    B, S, E = key.shape
    Sq = query.shape[1]
    d = E // n_heads
    assert d * n_heads == E

    f32 = jnp.float32
    bf16 = jnp.bfloat16
    scale = 1.0 / math.sqrt(d)

    # --- Wrapper-side per-head projections (shared (d,d) weights, nn.Linear
    # convention y = x @ W.T).  bf16 operands, f32 accumulation — same MXU
    # numerics as the kernel.  Done once per forward, NOT once per query tile.
    def project(x, w, length):
        xh = x.reshape(B, length, n_heads, d).astype(bf16)
        y = jnp.einsum("bshd,od->bsho", xh, w.astype(bf16),
                       preferred_element_type=f32)
        return y.reshape(B, length, E)

    k_p = project(key, wk, S).astype(bf16)
    v_p = project(value, wv, S).astype(bf16)
    # 1/sqrt(d) folded into the f32 projected activations, then one bf16 cast.
    q_p = (project(query, wq, Sq) * scale).astype(bf16)

    wo_t = wo.T.astype(bf16)              # (E, E): out = concat @ Wo^T
    bo2 = bo.reshape(1, E).astype(f32)

    # --- Query tiling: pad Sq to a tile multiple, slice the pad rows off.
    tq = _pick_q_tile(Sq)
    n_q_tiles = pl.cdiv(Sq, tq)
    sq_pad = n_q_tiles * tq
    if sq_pad != Sq:
        q_p = jnp.pad(q_p, ((0, 0), (0, sq_pad - Sq), (0, 0)))
    grid = (B, n_q_tiles)

    out_dtype = query.dtype
    out_isz = jnp.dtype(out_dtype).itemsize

    # --- VMEM budget: raise the default scoped limit (v5e default is 16 MiB),
    # but stay inside v7x's 64 MiB physical VMEM.
    est = (2 * S * E * 2            # K + V (bf16, single buffered)
           + 2 * tq * E * 2         # Q tile (double buffered)
           + 2 * tq * E * out_isz   # output tile (double buffered)
           + E * E * 2 + E * 4      # Wo^T + bias
           + tq * E * 2             # concat scratch
           + 3 * tq * S * 4)        # f32 score / exp temporaries
    vmem_limit = int(min(64 * 2**20, max(32 * 2**20, 2 * est)))

    # --- Advisory cost estimate for the XLA scheduler.
    steps = B * n_q_tiles
    cost = pl.CostEstimate(
        flops=steps * (4 * tq * S * E + 2 * tq * E * E),
        transcendentals=steps * tq * S * n_heads,
        bytes_accessed=(2 * B * S * E * 2 + B * sq_pad * E * 2
                        + E * E * 2 + E * 4 + B * sq_pad * E * out_isz),
    )

    kernel = functools.partial(_mha_kernel, n_heads=n_heads, head_dim=d)

    out = pl.pallas_call(
        kernel,
        out_shape=jax.ShapeDtypeStruct((B, sq_pad, E), out_dtype),
        grid_spec=pltpu.PrefetchScalarGridSpec(
            num_scalar_prefetch=0,
            grid=grid,
            in_specs=[
                pl.BlockSpec((1, tq, E), lambda b, t: (b, t, 0)),     # Q tile
                _single_buffered((1, S, E), lambda b, t: (b, 0, 0)),  # K
                _single_buffered((1, S, E), lambda b, t: (b, 0, 0)),  # V
                _single_buffered((E, E), lambda b, t: (0, 0)),        # Wo^T
                _single_buffered((1, E), lambda b, t: (0, 0)),        # bias
            ],
            out_specs=pl.BlockSpec((1, tq, E), lambda b, t: (b, t, 0)),
            scratch_shapes=[pltpu.VMEM((tq, E), bf16)],
        ),
        compiler_params=pltpu.CompilerParams(
            dimension_semantics=("parallel", "parallel"),
            vmem_limit_bytes=vmem_limit),
        cost_estimate=cost,
    )(q_p, k_p, v_p, wo_t, bo2)

    if sq_pad != Sq:
        out = out[:, :Sq]
    return out


def _reference(key, query, value, wk, wq, wv, wo, bo, n_heads):
    """Pure-JAX reference mirroring the PyTorch forward (mask=None, eval) with
    the kernel's MXU numerics (bf16 operands, f32 accumulation, f32 softmax)."""
    B, S, E = key.shape
    Sq = query.shape[1]
    d = E // n_heads
    bf, f32 = jnp.bfloat16, jnp.float32

    def mm(a, b):
        return jnp.matmul(a.astype(bf), b.astype(bf), preferred_element_type=f32)

    k = mm(key.reshape(B, S, n_heads, d), wk.T)
    q = mm(query.reshape(B, Sq, n_heads, d), wq.T)
    v = mm(value.reshape(B, S, n_heads, d), wv.T)
    q = jnp.transpose(q, (0, 2, 1, 3))
    k = jnp.transpose(k, (0, 2, 1, 3))
    v = jnp.transpose(v, (0, 2, 1, 3))
    prod = jnp.einsum("bhqd,bhkd->bhqk", q.astype(bf), k.astype(bf),
                      preferred_element_type=f32) / math.sqrt(d)
    scores = jax.nn.softmax(prod, axis=-1)
    ctx = jnp.einsum("bhqk,bhkd->bhqd", scores.astype(bf), v.astype(bf),
                     preferred_element_type=f32)
    concat = jnp.transpose(ctx, (0, 2, 1, 3)).reshape(B, Sq, E)
    return mm(concat, wo.T) + bo


if __name__ == "__main__":
    # Small, module-consistent shapes.
    B, S, E, H = 2, 8, 32, 4
    d = E // H

    root = jax.random.PRNGKey(0)
    k_wq, k_wk, k_wv, k_wo, k_bo, k_key, k_qry, k_val = jax.random.split(root, 8)

    # Deterministic parameter init (nn.Linear-like uniform scaling).
    lim_h = 1.0 / math.sqrt(d)
    lim_o = 1.0 / math.sqrt(E)
    wq = jax.random.uniform(k_wq, (d, d), jnp.float32, -lim_h, lim_h)
    wk = jax.random.uniform(k_wk, (d, d), jnp.float32, -lim_h, lim_h)
    wv = jax.random.uniform(k_wv, (d, d), jnp.float32, -lim_h, lim_h)
    wo = jax.random.uniform(k_wo, (E, E), jnp.float32, -lim_o, lim_o)
    bo = jax.random.uniform(k_bo, (E,), jnp.float32, -lim_o, lim_o)

    key_in = jax.random.normal(k_key, (B, S, E), jnp.float32)
    query_in = jax.random.normal(k_qry, (B, S, E), jnp.float32)
    value_in = jax.random.normal(k_val, (B, S, E), jnp.float32)

    mha = jax.jit(functools.partial(multi_head_attention, n_heads=H))
    out = jax.block_until_ready(mha(key_in, query_in, value_in,
                                    wk, wq, wv, wo, bo))

    ref = _reference(key_in, query_in, value_in, wk, wq, wv, wo, bo, H)
    assert out.shape == (B, S, E)
    # bf16 MXU numerics -> loosened tolerance vs the f32-exact PyTorch math.
    assert jnp.allclose(out, ref, atol=3e-2, rtol=3e-2), "mismatch vs reference"

    print("KERNEL_OK")
</pallas_src>

<mosaic_0001>
module attributes {stable_mosaic.version = 11 : i64} {
  func.func @_mha_kernel(%arg0: i32, %arg1: i32, %arg2: memref<1x8x32xbf16, #tpu.memory_space<vmem>>, %arg3: memref<1x8x32xbf16, #tpu.memory_space<vmem>>, %arg4: memref<1x8x32xbf16, #tpu.memory_space<vmem>>, %arg5: memref<32x32xbf16, #tpu.memory_space<vmem>>, %arg6: memref<1x32xf32, #tpu.memory_space<vmem>>, %arg7: memref<1x8x32xf32, #tpu.memory_space<vmem>>, %arg8: memref<8x32xbf16, #tpu.memory_space<vmem>>) attributes {dimension_semantics = [#tpu.dimension_semantics<parallel>, #tpu.dimension_semantics<parallel>], iteration_bounds = array<i64: 2, 1>, scalar_prefetch = 0 : i64, scratch_operands = 1 : i64, tpu.core_type = #tpu.core_type<tc>, window_params = [{transform_indices = @transform_0, window_bounds = array<i64: 1, 8, 32>}, {pipeline_mode = #tpu.pipeline_mode<synchronous>, transform_indices = @transform_1, window_bounds = array<i64: 1, 8, 32>}, {pipeline_mode = #tpu.pipeline_mode<synchronous>, transform_indices = @transform_2, window_bounds = array<i64: 1, 8, 32>}, {pipeline_mode = #tpu.pipeline_mode<synchronous>, transform_indices = @transform_3, window_bounds = array<i64: 32, 32>}, {pipeline_mode = #tpu.pipeline_mode<synchronous>, transform_indices = @transform_4, window_bounds = array<i64: 1, 32>}, {transform_indices = @transform_5, window_bounds = array<i64: 1, 8, 32>}]} {
    %c0 = arith.constant 0 : index
    %c0_0 = arith.constant 0 : index
    %c0_1 = arith.constant 0 : index
    %0 = vector.load %arg2[%c0, %c0_0, %c0_1] : memref<1x8x32xbf16, #tpu.memory_space<vmem>>, vector<1x8x8xbf16>
    %1 = vector.shape_cast %0 : vector<1x8x8xbf16> to vector<8x8xbf16>
    %c0_2 = arith.constant 0 : index
    %c0_3 = arith.constant 0 : index
    %c0_4 = arith.constant 0 : index
    %2 = vector.load %arg3[%c0_2, %c0_3, %c0_4] : memref<1x8x32xbf16, #tpu.memory_space<vmem>>, vector<1x8x8xbf16>
    %3 = vector.shape_cast %2 : vector<1x8x8xbf16> to vector<8x8xbf16>
    %c0_5 = arith.constant 0 : index
    %c0_6 = arith.constant 0 : index
    %c0_7 = arith.constant 0 : index
    %4 = vector.load %arg4[%c0_5, %c0_6, %c0_7] : memref<1x8x32xbf16, #tpu.memory_space<vmem>>, vector<1x8x8xbf16>
    %5 = vector.shape_cast %4 : vector<1x8x8xbf16> to vector<8x8xbf16>
    %cst = arith.constant dense<0.000000e+00> : vector<8x8xf32>
    %6 = tpu.matmul %1, %3, %cst {dimension_numbers = #tpu.dot_dimension_numbers<[1], [1], [0], [0], [0, 0, 1, 0], [], []>} : vector<8x8xbf16>, vector<8x8xbf16>, vector<8x8xf32> -> vector<8x8xf32>
    %cst_8 = arith.constant dense<0xFF800000> : vector<8xf32>
    %7 = vector.multi_reduction <maximumf>, %6, %cst_8 [1] : vector<8x8xf32> to vector<8xf32>
    %8 = vector.shape_cast %7 : vector<8xf32> to vector<8x1xf32>
    %9 = vector.broadcast %8 : vector<8x1xf32> to vector<8x8xf32>
    %10 = arith.subf %6, %9 : vector<8x8xf32>
    %11 = math.exp %10 : vector<8x8xf32>
    %cst_9 = arith.constant dense<0.000000e+00> : vector<8xf32>
    %12 = vector.multi_reduction <add>, %11, %cst_9 [1] : vector<8x8xf32> to vector<8xf32>
    %13 = vector.shape_cast %12 : vector<8xf32> to vector<8x1xf32>
    %14 = tpu.reciprocal %13 {approx = true} : vector<8x1xf32> -> vector<8x1xf32>
    %15 = vector.broadcast %14 : vector<8x1xf32> to vector<8x8xf32>
    %16 = arith.mulf %11, %15 : vector<8x8xf32>
    %17 = arith.truncf %16 : vector<8x8xf32> to vector<8x8xbf16>
    %cst_10 = arith.constant dense<0.000000e+00> : vector<8x8xf32>
    %18 = tpu.matmul %17, %5, %cst_10 {dimension_numbers = #tpu.dot_dimension_numbers<[1], [0], [0], [1], [0, 0, 1, 1], [], []>} : vector<8x8xbf16>, vector<8x8xbf16>, vector<8x8xf32> -> vector<8x8xf32>
    %19 = arith.truncf %18 : vector<8x8xf32> to vector<8x8xbf16>
    %c0_11 = arith.constant 0 : index
    %c0_12 = arith.constant 0 : index
    %20 = vector.load %arg8[%c0_11, %c0_12] : memref<8x32xbf16, #tpu.memory_space<vmem>>, vector<8x8xbf16>
    tpu.vector_store %arg8[%c0_11, %c0_12], %19 {strides = array<i32>} : memref<8x32xbf16, #tpu.memory_space<vmem>>, vector<8x8xbf16>,
    %c0_13 = arith.constant 0 : index
    %c0_14 = arith.constant 0 : index
    %c8 = arith.constant 8 : index
    %21 = vector.load %arg2[%c0_13, %c0_14, %c8] : memref<1x8x32xbf16, #tpu.memory_space<vmem>>, vector<1x8x8xbf16>
    %22 = vector.shape_cast %21 : vector<1x8x8xbf16> to vector<8x8xbf16>
    %c0_15 = arith.constant 0 : index
    %c0_16 = arith.constant 0 : index
    %c8_17 = arith.constant 8 : index
    %23 = vector.load %arg3[%c0_15, %c0_16, %c8_17] : memref<1x8x32xbf16, #tpu.memory_space<vmem>>, vector<1x8x8xbf16>
    %24 = vector.shape_cast %23 : vector<1x8x8xbf16> to vector<8x8xbf16>
    %c0_18 = arith.constant 0 : index
    %c0_19 = arith.constant 0 : index
    %c8_20 = arith.constant 8 : index
    %25 = vector.load %arg4[%c0_18, %c0_19, %c8_20] : memref<1x8x32xbf16, #tpu.memory_space<vmem>>, vector<1x8x8xbf16>
    %26 = vector.shape_cast %25 : vector<1x8x8xbf16> to vector<8x8xbf16>
    %cst_21 = arith.constant dense<0.000000e+00> : vector<8x8xf32>
    %27 = tpu.matmul %22, %24, %cst_21 {dimension_numbers = #tpu.dot_dimension_numbers<[1], [1], [0], [0], [0, 0, 1, 0], [], []>} : vector<8x8xbf16>, vector<8x8xbf16>, vector<8x8xf32> -> vector<8x8xf32>
    %cst_22 = arith.constant dense<0xFF800000> : vector<8xf32>
    %28 = vector.multi_reduction <maximumf>, %27, %cst_22 [1] : vector<8x8xf32> to vector<8xf32>
    %29 = vector.shape_cast %28 : vector<8xf32> to vector<8x1xf32>
    %30 = vector.broadcast %29 : vector<8x1xf32> to vector<8x8xf32>
    %31 = arith.subf %27, %30 : vector<8x8xf32>
    %32 = math.exp %31 : vector<8x8xf32>
    %cst_23 = arith.constant dense<0.000000e+00> : vector<8xf32>
    %33 = vector.multi_reduction <add>, %32, %cst_23 [1] : vector<8x8xf32> to vector<8xf32>
    %34 = vector.shape_cast %33 : vector<8xf32> to vector<8x1xf32>
    %35 = tpu.reciprocal %34 {approx = true} : vector<8x1xf32> -> vector<8x1xf32>
    %36 = vector.broadcast %35 : vector<8x1xf32> to vector<8x8xf32>
    %37 = arith.mulf %32, %36 : vector<8x8xf32>
    %38 = arith.truncf %37 : vector<8x8xf32> to vector<8x8xbf16>
    %cst_24 = arith.constant dense<0.000000e+00> : vector<8x8xf32>
    %39 = tpu.matmul %38, %26, %cst_24 {dimension_numbers = #tpu.dot_dimension_numbers<[1], [0], [0], [1], [0, 0, 1, 1], [], []>} : vector<8x8xbf16>, vector<8x8xbf16>, vector<8x8xf32> -> vector<8x8xf32>
    %40 = arith.truncf %39 : vector<8x8xf32> to vector<8x8xbf16>
    %c0_25 = arith.constant 0 : index
    %c8_26 = arith.constant 8 : index
    %41 = vector.load %arg8[%c0_25, %c8_26] : memref<8x32xbf16, #tpu.memory_space<vmem>>, vector<8x8xbf16>
    tpu.vector_store %arg8[%c0_25, %c8_26], %40 {strides = array<i32>} : memref<8x32xbf16, #tpu.memory_space<vmem>>, vector<8x8xbf16>,
    %c0_27 = arith.constant 0 : index
    %c0_28 = arith.constant 0 : index
    %c16 = arith.constant 16 : index
    %42 = vector.load %arg2[%c0_27, %c0_28, %c16] : memref<1x8x32xbf16, #tpu.memory_space<vmem>>, vector<1x8x8xbf16>
    %43 = vector.shape_cast %42 : vector<1x8x8xbf16> to vector<8x8xbf16>
    %c0_29 = arith.constant 0 : index
    %c0_30 = arith.constant 0 : index
    %c16_31 = arith.constant 16 : index
    %44 = vector.load %arg3[%c0_29, %c0_30, %c16_31] : memref<1x8x32xbf16, #tpu.memory_space<vmem>>, vector<1x8x8xbf16>
    %45 = vector.shape_cast %44 : vector<1x8x8xbf16> to vector<8x8xbf16>
    %c0_32 = arith.constant 0 : index
    %c0_33 = arith.constant 0 : index
    %c16_34 = arith.constant 16 : index
    %46 = vector.load %arg4[%c0_32, %c0_33, %c16_34] : memref<1x8x32xbf16, #tpu.memory_space<vmem>>, vector<1x8x8xbf16>
    %47 = vector.shape_cast %46 : vector<1x8x8xbf16> to vector<8x8xbf16>
    %cst_35 = arith.constant dense<0.000000e+00> : vector<8x8xf32>
    %48 = tpu.matmul %43, %45, %cst_35 {dimension_numbers = #tpu.dot_dimension_numbers<[1], [1], [0], [0], [0, 0, 1, 0], [], []>} : vector<8x8xbf16>, vector<8x8xbf16>, vector<8x8xf32> -> vector<8x8xf32>
    %cst_36 = arith.constant dense<0xFF800000> : vector<8xf32>
    %49 = vector.multi_reduction <maximumf>, %48, %cst_36 [1] : vector<8x8xf32> to vector<8xf32>
    %50 = vector.shape_cast %49 : vector<8xf32> to vector<8x1xf32>
    %51 = vector.broadcast %50 : vector<8x1xf32> to vector<8x8xf32>
    %52 = arith.subf %48, %51 : vector<8x8xf32>
    %53 = math.exp %52 : vector<8x8xf32>
    %cst_37 = arith.constant dense<0.000000e+00> : vector<8xf32>
    %54 = vector.multi_reduction <add>, %53, %cst_37 [1] : vector<8x8xf32> to vector<8xf32>
    %55 = vector.shape_cast %54 : vector<8xf32> to vector<8x1xf32>
    %56 = tpu.reciprocal %55 {approx = true} : vector<8x1xf32> -> vector<8x1xf32>
    %57 = vector.broadcast %56 : vector<8x1xf32> to vector<8x8xf32>
    %58 = arith.mulf %53, %57 : vector<8x8xf32>
    %59 = arith.truncf %58 : vector<8x8xf32> to vector<8x8xbf16>
    %cst_38 = arith.constant dense<0.000000e+00> : vector<8x8xf32>
    %60 = tpu.matmul %59, %47, %cst_38 {dimension_numbers = #tpu.dot_dimension_numbers<[1], [0], [0], [1], [0, 0, 1, 1], [], []>} : vector<8x8xbf16>, vector<8x8xbf16>, vector<8x8xf32> -> vector<8x8xf32>
    %61 = arith.truncf %60 : vector<8x8xf32> to vector<8x8xbf16>
    %c0_39 = arith.constant 0 : index
    %c16_40 = arith.constant 16 : index
    %62 = vector.load %arg8[%c0_39, %c16_40] : memref<8x32xbf16, #tpu.memory_space<vmem>>, vector<8x8xbf16>
    tpu.vector_store %arg8[%c0_39, %c16_40], %61 {strides = array<i32>} : memref<8x32xbf16, #tpu.memory_space<vmem>>, vector<8x8xbf16>,
    %c0_41 = arith.constant 0 : index
    %c0_42 = arith.constant 0 : index
    %c24 = arith.constant 24 : index
    %63 = vector.load %arg2[%c0_41, %c0_42, %c24] : memref<1x8x32xbf16, #tpu.memory_space<vmem>>, vector<1x8x8xbf16>
    %64 = vector.shape_cast %63 : vector<1x8x8xbf16> to vector<8x8xbf16>
    %c0_43 = arith.constant 0 : index
    %c0_44 = arith.constant 0 : index
    %c24_45 = arith.constant 24 : index
    %65 = vector.load %arg3[%c0_43, %c0_44, %c24_45] : memref<1x8x32xbf16, #tpu.memory_space<vmem>>, vector<1x8x8xbf16>
    %66 = vector.shape_cast %65 : vector<1x8x8xbf16> to vector<8x8xbf16>
    %c0_46 = arith.constant 0 : index
    %c0_47 = arith.constant 0 : index
    %c24_48 = arith.constant 24 : index
    %67 = vector.load %arg4[%c0_46, %c0_47, %c24_48] : memref<1x8x32xbf16, #tpu.memory_space<vmem>>, vector<1x8x8xbf16>
    %68 = vector.shape_cast %67 : vector<1x8x8xbf16> to vector<8x8xbf16>
    %cst_49 = arith.constant dense<0.000000e+00> : vector<8x8xf32>
    %69 = tpu.matmul %64, %66, %cst_49 {dimension_numbers = #tpu.dot_dimension_numbers<[1], [1], [0], [0], [0, 0, 1, 0], [], []>} : vector<8x8xbf16>, vector<8x8xbf16>, vector<8x8xf32> -> vector<8x8xf32>
    %cst_50 = arith.constant dense<0xFF800000> : vector<8xf32>
    %70 = vector.multi_reduction <maximumf>, %69, %cst_50 [1] : vector<8x8xf32> to vector<8xf32>
    %71 = vector.shape_cast %70 : vector<8xf32> to vector<8x1xf32>
    %72 = vector.broadcast %71 : vector<8x1xf32> to vector<8x8xf32>
    %73 = arith.subf %69, %72 : vector<8x8xf32>
    %74 = math.exp %73 : vector<8x8xf32>
    %cst_51 = arith.constant dense<0.000000e+00> : vector<8xf32>
    %75 = vector.multi_reduction <add>, %74, %cst_51 [1] : vector<8x8xf32> to vector<8xf32>
    %76 = vector.shape_cast %75 : vector<8xf32> to vector<8x1xf32>
    %77 = tpu.reciprocal %76 {approx = true} : vector<8x1xf32> -> vector<8x1xf32>
    %78 = vector.broadcast %77 : vector<8x1xf32> to vector<8x8xf32>
    %79 = arith.mulf %74, %78 : vector<8x8xf32>
    %80 = arith.truncf %79 : vector<8x8xf32> to vector<8x8xbf16>
    %cst_52 = arith.constant dense<0.000000e+00> : vector<8x8xf32>
    %81 = tpu.matmul %80, %68, %cst_52 {dimension_numbers = #tpu.dot_dimension_numbers<[1], [0], [0], [1], [0, 0, 1, 1], [], []>} : vector<8x8xbf16>, vector<8x8xbf16>, vector<8x8xf32> -> vector<8x8xf32>
    %82 = arith.truncf %81 : vector<8x8xf32> to vector<8x8xbf16>
    %c0_53 = arith.constant 0 : index
    %c24_54 = arith.constant 24 : index
    %83 = vector.load %arg8[%c0_53, %c24_54] : memref<8x32xbf16, #tpu.memory_space<vmem>>, vector<8x8xbf16>
    tpu.vector_store %arg8[%c0_53, %c24_54], %82 {strides = array<i32>} : memref<8x32xbf16, #tpu.memory_space<vmem>>, vector<8x8xbf16>,
    %c0_55 = arith.constant 0 : index
    %c0_56 = arith.constant 0 : index
    %84 = vector.load %arg8[%c0_55, %c0_56] : memref<8x32xbf16, #tpu.memory_space<vmem>>, vector<8x32xbf16>
    %c0_57 = arith.constant 0 : index
    %c0_58 = arith.constant 0 : index
    %85 = vector.load %arg5[%c0_57, %c0_58] : memref<32x32xbf16, #tpu.memory_space<vmem>>, vector<32x32xbf16>
    %cst_59 = arith.constant dense<0.000000e+00> : vector<8x32xf32>
    %86 = tpu.matmul %84, %85, %cst_59 {dimension_numbers = #tpu.dot_dimension_numbers<[1], [0], [0], [1], [0, 0, 1, 1], [], []>} : vector<8x32xbf16>, vector<32x32xbf16>, vector<8x32xf32> -> vector<8x32xf32>
    %c0_60 = arith.constant 0 : index
    %c0_61 = arith.constant 0 : index
    %87 = vector.load %arg6[%c0_60, %c0_61] : memref<1x32xf32, #tpu.memory_space<vmem>>, vector<1x32xf32>
    %88 = vector.broadcast %87 : vector<1x32xf32> to vector<8x32xf32>
    %89 = arith.addf %86, %88 : vector<8x32xf32>
    %c0_62 = arith.constant 0 : index
    %c0_63 = arith.constant 0 : index
    %c0_64 = arith.constant 0 : index
    %90 = vector.load %arg7[%c0_62, %c0_63, %c0_64] : memref<1x8x32xf32, #tpu.memory_space<vmem>>, vector<1x8x32xf32>
    %91 = vector.shape_cast %90 : vector<1x8x32xf32> to vector<8x32xf32>
    %92 = vector.shape_cast %89 : vector<8x32xf32> to vector<1x8x32xf32>
    tpu.vector_store %arg7[%c0_62, %c0_63, %c0_64], %92 {strides = array<i32>} : memref<1x8x32xf32, #tpu.memory_space<vmem>>, vector<1x8x32xf32>,
    return
  }
  func.func @transform_0(%arg0: i32, %arg1: i32) -> (i32, i32, i32) {
    %c0_i32 = arith.constant 0 : i32
    %c0_i32_0 = arith.constant 0 : i32
    return %arg0, %arg1, %c0_i32 : i32, i32, i32
  }
  func.func @transform_1(%arg0: i32, %arg1: i32) -> (i32, i32, i32) {
    %c0_i32 = arith.constant 0 : i32
    %c0_i32_0 = arith.constant 0 : i32
    %c0_i32_1 = arith.constant 0 : i32
    return %arg0, %c0_i32, %c0_i32_0 : i32, i32, i32
  }
  func.func @transform_2(%arg0: i32, %arg1: i32) -> (i32, i32, i32) {
    %c0_i32 = arith.constant 0 : i32
    %c0_i32_0 = arith.constant 0 : i32
    %c0_i32_1 = arith.constant 0 : i32
    return %arg0, %c0_i32, %c0_i32_0 : i32, i32, i32
  }
  func.func @transform_3(%arg0: i32, %arg1: i32) -> (i32, i32) {
    %c0_i32 = arith.constant 0 : i32
    %c0_i32_0 = arith.constant 0 : i32
    %c0_i32_1 = arith.constant 0 : i32
    return %c0_i32, %c0_i32_0 : i32, i32
  }
  func.func @transform_4(%arg0: i32, %arg1: i32) -> (i32, i32) {
    %c0_i32 = arith.constant 0 : i32
    %c0_i32_0 = arith.constant 0 : i32
    %c0_i32_1 = arith.constant 0 : i32
    return %c0_i32, %c0_i32_0 : i32, i32
  }
  func.func @transform_5(%arg0: i32, %arg1: i32) -> (i32, i32, i32) {
    %c0_i32 = arith.constant 0 : i32
    %c0_i32_0 = arith.constant 0 : i32
    return %arg0, %arg1, %c0_i32 : i32, i32, i32
  }
}

</mosaic_0001>

<llo_original>
// kernel: multi_head_attention.1
$region0: #{multi_head_attention.1}
  #allocation0 [shape = 'u32[]', space=smem, size = 0x4, offset = 0x4, fixed_abs, tag = 'smem constant byte address 0x4 - core index']
  #allocation1 [shape = 'u32[144,128]{1,0:T(1,128)}', space=vmem, size = 0x12000, scoped, tag = 'internal scratch']
  #allocation2 [shape = 'bf16[8,32]{1,0:T(8,128)(2,1)}', space=vmem, size = 0x800, scoped, tag = 'scratch operand']
  %s0 = inlined_call_operand.vmem [shape: bf16[2,8,32], index: 0, kind: input, shape index: {}]
  %s1 = inlined_call_operand.vmem [shape: bf16[2,8,32], index: 1, kind: input, shape index: {}]
  %s2 = inlined_call_operand.vmem [shape: bf16[2,8,32], index: 2, kind: input, shape index: {}]
  %s3 = inlined_call_operand.vmem [shape: bf16[32,32], index: 3, kind: input, shape index: {}]
  %s4 = inlined_call_operand.vmem [shape: f32[1,32], index: 4, kind: input, shape index: {}]
  %s5 = inlined_call_operand.hbm [shape: f32[2,8,32], index: 5, kind: output, shape index: {}]
  %s6 = sld [smem:[#allocation0]]
  $region53: #{multi_head_attention.1} parent=0
    _
  %s8 = ssub.s32 1, %s6
  %s9 = scalar_select 0, %s8, %s6
  $region1: #{multi_head_attention.1} parent=0
    #allocation3 [shape = 'u8[8192]{0}', space=vmem, size = 0x2000, scoped, tag = 'output window, operand 0']
    #allocation4 [shape = 's32[2]{0}', space=sflag, size = 0x8, scoped, tag = 'scoped memory for multi_head_attention.1']
    %10 = vsyncpa [#allocation4], 0
    %s11 = scalar_lea.sflag [#allocation4], 1
    %12 = vsyncpa %s11, 0
    loop: start=0, step=1, limit=4
    $region2: #{multi_head_attention.1} parent=1 // loop_pre_header
      _
    $region3: #{multi_head_attention.1} parent=1 // loop_header
      %s14 = sphi 0, %s18
      %p15 = scmp.ge.s32.totalorder %s14, 4
      %s21 = sphi 0, %s33
      %s22 = sphi 0, %s29
      %s23 = sphi 0, %s21
      %s24 = sphi 0, %s22
      %s25 = sphi 0, %s23
      %s26 = sphi 0, %s24
      %s38 = sphi 0, %s40
      %s41 = sphi 0, %s38
      %s42 = sphi 0, %s41
      %s58 = sphi 0, %s42
      %s64 = sphi 0, %s66
      %s67 = sphi 0, %s64
      %s68 = sphi 0, %s67
      %s84 = sphi 0, %s68
      %s90 = sphi 0, %s92
      %s93 = sphi 0, %s90
      %s94 = sphi 0, %s93
      %s110 = sphi 0, %s94
      %s114 = sphi 0, %s114
      %s116 = sphi 0, %s114
      %s117 = sphi 0, %s116
      %s131 = sphi 0, %s117
      %s135 = sphi 0, %s135
      %s137 = sphi 0, %s135
      %s138 = sphi 0, %s137
      %s152 = sphi 0, %s138
      %s160 = sphi 0, %s162
      %s163 = sphi 0, %s160
      %s164 = sphi 0, %s163
      %s180 = sphi 0, %s164
    $region4: #{multi_head_attention.1} parent=1 // loop_header_branch
      %17 = sbr.rel (%p15) target = $region8
    $region5: #{multi_head_attention.1} parent=1 // loop_body
      %s19 = ssub.s32 %s14, 1
      %s20 = ssub.s32 %s14, 2
      %s27 = sadd.s32 1, %s22
      %p28 = scmp.ge.s32.totalorder %s27, 1
      %s29 = scalar_select %p28, 0, %s27
      %s30 = sadd.s32 1, %s21
      %s31 = scalar_select %p28, %s30, %s21
      %p32 = scmp.ge.s32.totalorder %s31, 2
      %s33 = scalar_select %p32, 0, %s31
      %s34 = ssub.s32 %s21, %s33
      %s35 = ssub.s32 %s22, %s29
      %s36 = sor.u32 %s34, %s35
      %p37 = scmp.eq.s32.totalorder %s36, 0
      %s39 = sadd.s32 %s38, 1
      %s40 = scalar_select %p37, %s38, %s39
      %p43 = pneg %p37
      %p44 = scmp.eq.s32.totalorder %s14, 1
      %p45 = por %p43, %p44
      %p46 = scmp.ne.s32.totalorder %s38, %s41
      %p47 = scmp.eq.s32.totalorder %s14, 0
      %p48 = por %p46, %p47
      %p49 = scmp.ne.s32.totalorder %s38, %s41
      %p50 = scmp.eq.s32.totalorder %s19, 1
      %p51 = por %p49, %p50
      %p52 = scmp.ne.s32.totalorder %s41, %s42
      %p53 = scmp.eq.s32.totalorder %s19, 0
      %p54 = por %p52, %p53
      %p55 = scmp.ne.s32.totalorder %s41, %s42
      %p56 = scmp.eq.s32.totalorder %s20, 1
      %p57 = por %p55, %p56
      %p59 = scmp.ne.s32.totalorder %s42, %s58
      %p60 = scmp.eq.s32.totalorder %s20, 0
      %p61 = por %p59, %p60
      %s62 = ssub.s32 %s21, %s33
      %p63 = scmp.eq.s32.totalorder %s62, 0
      %s65 = sadd.s32 %s64, 1
      %s66 = scalar_select %p63, %s64, %s65
      %p69 = pneg %p63
      %p70 = scmp.eq.s32.totalorder %s14, 1
      %p71 = por %p69, %p70
      %p72 = scmp.ne.s32.totalorder %s64, %s67
      %p73 = scmp.eq.s32.totalorder %s14, 0
      %p74 = por %p72, %p73
      %p75 = scmp.ne.s32.totalorder %s64, %s67
      %p76 = scmp.eq.s32.totalorder %s19, 1
      %p77 = por %p75, %p76
      %p78 = scmp.ne.s32.totalorder %s67, %s68
      %p79 = scmp.eq.s32.totalorder %s19, 0
      %p80 = por %p78, %p79
      %p81 = scmp.ne.s32.totalorder %s67, %s68
      %p82 = scmp.eq.s32.totalorder %s20, 1
      %p83 = por %p81, %p82
      %p85 = scmp.ne.s32.totalorder %s68, %s84
      %p86 = scmp.eq.s32.totalorder %s20, 0
      %p87 = por %p85, %p86
      %s88 = ssub.s32 %s21, %s33
      %p89 = scmp.eq.s32.totalorder %s88, 0
      %s91 = sadd.s32 %s90, 1
      %s92 = scalar_select %p89, %s90, %s91
      %p95 = pneg %p89
      %p96 = scmp.eq.s32.totalorder %s14, 1
      %p97 = por %p95, %p96
      %p98 = scmp.ne.s32.totalorder %s90, %s93
      %p99 = scmp.eq.s32.totalorder %s14, 0
      %p100 = por %p98, %p99
      %p101 = scmp.ne.s32.totalorder %s90, %s93
      %p102 = scmp.eq.s32.totalorder %s19, 1
      %p103 = por %p101, %p102
      %p104 = scmp.ne.s32.totalorder %s93, %s94
      %p105 = scmp.eq.s32.totalorder %s19, 0
      %p106 = por %p104, %p105
      %p107 = scmp.ne.s32.totalorder %s93, %s94
      %p108 = scmp.eq.s32.totalorder %s20, 1
      %p109 = por %p107, %p108
      %p111 = scmp.ne.s32.totalorder %s94, %s110
      %p112 = scmp.eq.s32.totalorder %s20, 0
      %p113 = por %p111, %p112
      %s115 = sadd.s32 %s114, 1
      %p118 = scmp.eq.s32.totalorder %s14, 1
      %p119 = scmp.ne.s32.totalorder %s114, %s116
      %p120 = scmp.eq.s32.totalorder %s14, 0
      %p121 = por %p119, %p120
      %p122 = scmp.ne.s32.totalorder %s114, %s116
      %p123 = scmp.eq.s32.totalorder %s19, 1
      %p124 = por %p122, %p123
      %p125 = scmp.ne.s32.totalorder %s116, %s117
      %p126 = scmp.eq.s32.totalorder %s19, 0
      %p127 = por %p125, %p126
      %p128 = scmp.ne.s32.totalorder %s116, %s117
      %p129 = scmp.eq.s32.totalorder %s20, 1
      %p130 = por %p128, %p129
      %p132 = scmp.ne.s32.totalorder %s117, %s131
      %p133 = scmp.eq.s32.totalorder %s20, 0
      %p134 = por %p132, %p133
      %s136 = sadd.s32 %s135, 1
      %p139 = scmp.eq.s32.totalorder %s14, 1
      %p140 = scmp.ne.s32.totalorder %s135, %s137
      %p141 = scmp.eq.s32.totalorder %s14, 0
      %p142 = por %p140, %p141
      %p143 = scmp.ne.s32.totalorder %s135, %s137
      %p144 = scmp.eq.s32.totalorder %s19, 1
      %p145 = por %p143, %p144
      %p146 = scmp.ne.s32.totalorder %s137, %s138
      %p147 = scmp.eq.s32.totalorder %s19, 0
      %p148 = por %p146, %p147
      %p149 = scmp.ne.s32.totalorder %s137, %s138
      %p150 = scmp.eq.s32.totalorder %s20, 1
      %p151 = por %p149, %p150
      %p153 = scmp.ne.s32.totalorder %s138, %s152
      %p154 = scmp.eq.s32.totalorder %s20, 0
      %p155 = por %p153, %p154
      %s156 = ssub.s32 %s21, %s33
      %s157 = ssub.s32 %s22, %s29
      %s158 = sor.u32 %s156, %s157
      %p159 = scmp.eq.s32.totalorder %s158, 0
      %s161 = sadd.s32 %s160, 1
      %s162 = scalar_select %p159, %s160, %s161
      %p165 = pneg %p159
      %p166 = scmp.eq.s32.totalorder %s14, 1
      %p167 = por %p165, %p166
      %p168 = scmp.ne.s32.totalorder %s160, %s163
      %p169 = scmp.eq.s32.totalorder %s14, 0
      %p170 = por %p168, %p169
      %p171 = scmp.ne.s32.totalorder %s160, %s163
      %p172 = scmp.eq.s32.totalorder %s19, 1
      %p173 = por %p171, %p172
      %p174 = scmp.ne.s32.totalorder %s163, %s164
      %p175 = scmp.eq.s32.totalorder %s19, 0
      %p176 = por %p174, %p175
      %p177 = scmp.ne.s32.totalorder %s163, %s164
      %p178 = scmp.eq.s32.totalorder %s20, 1
      %p179 = por %p177, %p178
      %p181 = scmp.ne.s32.totalorder %s164, %s180
      %p182 = scmp.eq.s32.totalorder %s20, 0
      %p183 = por %p181, %p182
      %p184 = scmp.le.s32.totalorder 1, %s14
      %p185 = scmp.lt.s32.totalorder %s14, 3
      %p186 = pnand %p184, %p185
      %p187 = pneg %p186
      // Predicated region
      $region9: #{multi_head_attention.1} parent=5 // pred_check
        _
      $region10: #{multi_head_attention.1} parent=5 // pred_check_branch
        %189 = sbr.rel (%p186) target = $region12
      $region11: #{multi_head_attention.1} parent=5 // pred_region
        %s190 = ssub.s32 %s14, 1
        // Predicated region
        $region13: #{multi_head_attention.1} parent=11 // pred_check
          %p191 = pneg %p80
        $region14: #{multi_head_attention.1} parent=11 // pred_check_branch
          %193 = sbr.rel (%p191) target = $region16
        $region15: #{multi_head_attention.1} parent=11 // pred_region
          %p194 = scmp.lt.s32.totalorder %s23, 1
          %s195 = scalar_select %p194, %s23, 1
          %s196 = smul.addr %s195, 4
          %s197 = scalar_lea.vmem %s1, %s196
        $region16: #{multi_head_attention.1} parent=11 // pred_fallthru
          _
        // Predicated region
        $region17: #{multi_head_attention.1} parent=11 // pred_check
          %p198 = pneg %p106
        $region18: #{multi_head_attention.1} parent=11 // pred_check_branch
          %200 = sbr.rel (%p198) target = $region20
        $region19: #{multi_head_attention.1} parent=11 // pred_region
          %p201 = scmp.lt.s32.totalorder %s23, 1
          %s202 = scalar_select %p201, %s23, 1
          %s203 = smul.addr %s202, 4
          %s204 = scalar_lea.vmem %s2, %s203
        $region20: #{multi_head_attention.1} parent=11 // pred_fallthru
          _
        // Predicated region
        $region21: #{multi_head_attention.1} parent=11 // pred_check
          %p205 = pneg %p127
        $region22: #{multi_head_attention.1} parent=11 // pred_check_branch
          %207 = sbr.rel (%p205) target = $region24
        $region23: #{multi_head_attention.1} parent=11 // pred_region
          _
        $region24: #{multi_head_attention.1} parent=11 // pred_fallthru
          _
        // Predicated region
        $region25: #{multi_head_attention.1} parent=11 // pred_check
          %p208 = pneg %p148
        $region26: #{multi_head_attention.1} parent=11 // pred_check_branch
          %210 = sbr.rel (%p208) target = $region28
        $region27: #{multi_head_attention.1} parent=11 // pred_region
          _
        $region28: #{multi_head_attention.1} parent=11 // pred_fallthru
          _
      $region12: #{multi_head_attention.1} parent=5 // pred_fallthru
        _
      %p211 = scmp.lt.s32.totalorder %s14, 2
      // Predicated region
      $region29: #{multi_head_attention.1} parent=5 // pred_check
        %p212 = pneg %p211
      $region30: #{multi_head_attention.1} parent=5 // pred_check_branch
        %214 = sbr.rel (%p212) target = $region32
      $region31: #{multi_head_attention.1} parent=5 // pred_region
        // Predicated region
        $region33: #{multi_head_attention.1} parent=31 // pred_check
          %p215 = pneg %p48
        $region34: #{multi_head_attention.1} parent=31 // pred_check_branch
          %217 = sbr.rel (%p215) target = $region36
        $region35: #{multi_head_attention.1} parent=31 // pred_region
          %p218 = scmp.lt.s32.totalorder %s21, 1
          %s219 = scalar_select %p218, %s21, 1
          %p220 = scmp.lt.s32.totalorder %s22, 0
          %s221 = scalar_select %p220, %s22, 0
          %s222 = sadd.s32 %s221, %s219
          %s223 = smul.addr %s222, 4
          %s224 = scalar_lea.vmem %s0, %s223
        $region36: #{multi_head_attention.1} parent=31 // pred_fallthru
          _
      $region32: #{multi_head_attention.1} parent=5 // pred_fallthru
        _
      %p225 = scmp.le.s32.totalorder 1, %s14
      %p226 = scmp.lt.s32.totalorder %s14, 3
      %p227 = pnand %p225, %p226
      %p228 = pneg %p227
      // Predicated region
      $region37: #{multi_head_attention.1} parent=5 // pred_check
        _
      $region38: #{multi_head_attention.1} parent=5 // pred_check_branch
        %230 = sbr.rel (%p227) target = $region40
      $region39: #{multi_head_attention.1} parent=5 // pred_region
        %s231 = ssub.s32 %s14, 1
        %p232 = scmp.lt.s32.totalorder %s23, 1
        %s233 = scalar_select %p232, %s23, 1
        %p234 = scmp.lt.s32.totalorder %s24, 0
        %s235 = scalar_select %p234, %s24, 0
        %s236 = sadd.s32 %s235, %s233
        %s237 = smul.addr %s236, 4
        %s238 = scalar_lea.vmem %s0, %s237
        %p239 = pneg %p54
        %p240 = pneg %p51
        %p241 = scmp.lt.s32.totalorder %s23, 1
        %s242 = scalar_select %p241, %s23, 1
        %s243 = smul.addr %s242, 4
        %s244 = scalar_lea.vmem %s1, %s243
        %p245 = pneg %p80
        %p246 = pneg %p77
        %p247 = scmp.lt.s32.totalorder %s23, 1
        %s248 = scalar_select %p247, %s23, 1
        %s249 = smul.addr %s248, 4
        %s250 = scalar_lea.vmem %s2, %s249
        %p251 = pneg %p106
        %p252 = pneg %p103
        %p253 = pneg %p127
        %p254 = pneg %p124
        %p255 = pneg %p148
        %p256 = pneg %p145
        %p257 = pneg %p176
        %p258 = pneg %p173
        %s259 = sand.u32 %s163, 1
        %s260 = scalar_lea.sflag [#allocation4], %s259
        %s261 = sand.u32 %s163, 1
        %s262 = smul.addr %s261, 8
        %s263 = scalar_lea.vmem [#allocation3], %s262
        %p264 = scmp.lt.s32.totalorder %s23, 1
        %s265 = scalar_select %p264, %s23, 1
        %p266 = scmp.lt.s32.totalorder %s24, 0
        %s267 = scalar_select %p266, %s24, 0
        %s268 = sadd.s32 %s267, %s265
        %s269 = smul.addr %s268, 4
        %s270 = scalar_lea.vmem %s0, %s269
        %p271 = scmp.lt.s32.totalorder %s23, 1
        %s272 = scalar_select %p271, %s23, 1
        %s273 = smul.addr %s272, 4
        %s274 = scalar_lea.vmem %s1, %s273
        %p275 = scmp.lt.s32.totalorder %s23, 1
        %s276 = scalar_select %p275, %s23, 1
        %s277 = smul.addr %s276, 4
        %s278 = scalar_lea.vmem %s2, %s277
        %v280 = vld [vmem:[%s270] sm:$0xf]
        %v281 = vld [vmem:[%s274] sm:$0xf]
        %v282 = vld [vmem:[%s278] sm:$0xf]
        %vm283 = vcmask 64512
        %v285 = vsel %vm283, %v280, 0
        %v288 = vsel %vm283, %v281, 0
        %290 = vmatprep.subr.bf16.mxu0 0
        %291 = vmatpush1.bf16.xpose.msra.mxu0 0
        %292 = vmatprep.subr.bf16.mxu0 0
        %293 = vmatpush1.bf16.xpose.msra.mxu0 0
        %294 = vmatprep.subr.bf16.mxu0 0
        %295 = vmatpush1.bf16.xpose.msra.mxu0 0
        %296 = vmatprep.subr.bf16.mxu0 0
        %297 = vmatpush1.bf16.xpose.msra.mxu0 0
        %298 = vmatprep.subr.bf16.mxu0 0
        %299 = vmatpush1.bf16.xpose.msra.mxu0 0
        %300 = vmatprep.subr.bf16.mxu0 0
        %301 = vmatpush1.bf16.xpose.msra.mxu0 0
        %302 = vmatprep.subr.bf16.mxu0 0
        %303 = vmatpush1.bf16.xpose.msra.mxu0 0
        %304 = vmatprep.subr.bf16.mxu0 0
        %305 = vmatpush1.bf16.xpose.msra.mxu0 %v288
        %306 = vmatprep.subr.bf16.mxu0 0
        %307 = vmatpush2.bf16.xpose.msra.mxu0 0
        %308 = vmatprep.subr.bf16.mxu0 0
        %309 = vmatpush2.bf16.xpose.msra.mxu0 0
        %310 = vmatprep.subr.bf16.mxu0 0
        %311 = vmatpush2.bf16.xpose.msra.mxu0 0
        %312 = vmatprep.subr.bf16.mxu0 0
        %313 = vmatpush2.bf16.xpose.msra.mxu0 0
        %314 = vmatprep.subr.bf16.mxu0 0
        %315 = vmatpush2.bf16.xpose.msra.mxu0 0
        %316 = vmatprep.subr.bf16.mxu0 0
        %317 = vmatpush2.bf16.xpose.msra.mxu0 0
        %318 = vmatprep.subr.bf16.mxu0 0
        %319 = vmatpush2.bf16.xpose.msra.mxu0 0
        %320 = vmatprep.subr.bf16.mxu0 0
        %321 = vmatpush2.bf16.xpose.msra.mxu0 0
        %322 = vmatprep.mubr.bf16.mxu0 0
        %323 = vmatmul.mubr.bf16.gmra.mxu0 %v285
        %v324 = vpop.f32.mrf.mxu0
        %v325 = vadd.f32 0.0, %v324
        %v326 = vpop.f32.mrf.mxu0
        %v327 = vpop.f32.mrf.mxu0
        %v328 = vpop.f32.mrf.mxu0
        %329 = vdwg.mxu0
        %v330 = vsel %vm283, %v325, -inf
        %331 = vmax.xlane.f32.xlu0 %v330
        %v332 = vpop.xlane.xlu0 %331
        %v333 = vsub.f32 %v325, %v332
        %v334 = vmul.f32 %v333, 1.442695
        %v335 = vpow.pop %v334
        %v336 = vsel %vm283, %v335, 0.0
        %337 = vadd.xlane.f32.xlu0 %v336
        %v338 = vpop.xlane.xlu0 %337
        %v339 = vrcp.pop %v338
        %v340 = vmul.f32 %v335, %v339
        %v341 = vpack.c.bf16 %v340, %v340
        %v343 = vsel %vm283, %v341, 0
        %vm345 = vcmask 1043456
        %v347 = vsel %vm345, %v282, 0
        %349 = vmatprep.subr.bf16.mxu0 0
        %350 = vmatpush1.bf16.msra.mxu0 0
        %351 = vmatprep.subr.bf16.mxu0 0
        %352 = vmatpush1.bf16.msra.mxu0 0
        %353 = vmatprep.subr.bf16.mxu0 0
        %354 = vmatpush1.bf16.msra.mxu0 0
        %355 = vmatprep.subr.bf16.mxu0 0
        %356 = vmatpush1.bf16.msra.mxu0 0
        %357 = vmatprep.subr.bf16.mxu0 0
        %358 = vmatpush1.bf16.msra.mxu0 0
        %359 = vmatprep.subr.bf16.mxu0 0
        %360 = vmatpush1.bf16.msra.mxu0 0
        %361 = vmatprep.subr.bf16.mxu0 0
        %362 = vmatpush1.bf16.msra.mxu0 0
        %363 = vmatprep.subr.bf16.mxu0 0
        %364 = vmatpush1.bf16.msra.mxu0 %v347
        %365 = vmatprep.subr.bf16.mxu0 0
        %366 = vmatpush2.bf16.msra.mxu0 0
        %367 = vmatprep.subr.bf16.mxu0 0
        %368 = vmatpush2.bf16.msra.mxu0 0
        %369 = vmatprep.subr.bf16.mxu0 0
        %370 = vmatpush2.bf16.msra.mxu0 0
        %371 = vmatprep.subr.bf16.mxu0 0
        %372 = vmatpush2.bf16.msra.mxu0 0
        %373 = vmatprep.subr.bf16.mxu0 0
        %374 = vmatpush2.bf16.msra.mxu0 0
        %375 = vmatprep.subr.bf16.mxu0 0
        %376 = vmatpush2.bf16.msra.mxu0 0
        %377 = vmatprep.subr.bf16.mxu0 0
        %378 = vmatpush2.bf16.msra.mxu0 0
        %379 = vmatprep.subr.bf16.mxu0 0
        %380 = vmatpush2.bf16.msra.mxu0 0
        %381 = vmatprep.mubr.bf16.mxu0 0
        %382 = vmatmul.mubr.bf16.gmra.mxu0 %v343
        %v383 = vpop.f32.mrf.mxu0
        %v384 = vadd.f32 0.0, %v383
        %v385 = vpop.f32.mrf.mxu0
        %v386 = vpop.f32.mrf.mxu0
        %v387 = vpop.f32.mrf.mxu0
        %388 = vdwg.mxu0
        %v389 = vpack.c.bf16 %v384, %v384
        %vm390 = vcmask 60416
        %391 = vst.msk [vmem:[#allocation2] sm:$0xf] %vm390, %v389
        %v392 = vld [vmem:[%s270] sm:$0xf]
        %v393 = vld [vmem:[%s274] sm:$0xf]
        %v394 = vld [vmem:[%s278] sm:$0xf]
        %v396 = vunpack.c.l.b16 %v392
        %v397 = vpack.c.b16 %v396, %v396
        %398 = vrot.lane.b32.xlu0 %v397, 120
        %v399 = vpop.permute.xlu0 %398
        %v401 = vunpack.c.l.b16 %v393
        %v402 = vpack.c.b16 %v401, %v401
        %403 = vrot.lane.b32.xlu0 %v402, 120
        %v404 = vpop.permute.xlu0 %403
        %v406 = vsel %vm283, %v399, 0
        %v409 = vsel %vm283, %v404, 0
        %411 = vmatprep.subr.bf16.mxu0 0
        %412 = vmatpush1.bf16.xpose.msra.mxu0 0
        %413 = vmatprep.subr.bf16.mxu0 0
        %414 = vmatpush1.bf16.xpose.msra.mxu0 0
        %415 = vmatprep.subr.bf16.mxu0 0
        %416 = vmatpush1.bf16.xpose.msra.mxu0 0
        %417 = vmatprep.subr.bf16.mxu0 0
        %418 = vmatpush1.bf16.xpose.msra.mxu0 0
        %419 = vmatprep.subr.bf16.mxu0 0
        %420 = vmatpush1.bf16.xpose.msra.mxu0 0
        %421 = vmatprep.subr.bf16.mxu0 0
        %422 = vmatpush1.bf16.xpose.msra.mxu0 0
        %423 = vmatprep.subr.bf16.mxu0 0
        %424 = vmatpush1.bf16.xpose.msra.mxu0 0
        %425 = vmatprep.subr.bf16.mxu0 0
        %426 = vmatpush1.bf16.xpose.msra.mxu0 %v409
        %427 = vmatprep.subr.bf16.mxu0 0
        %428 = vmatpush2.bf16.xpose.msra.mxu0 0
        %429 = vmatprep.subr.bf16.mxu0 0
        %430 = vmatpush2.bf16.xpose.msra.mxu0 0
        %431 = vmatprep.subr.bf16.mxu0 0
        %432 = vmatpush2.bf16.xpose.msra.mxu0 0
        %433 = vmatprep.subr.bf16.mxu0 0
        %434 = vmatpush2.bf16.xpose.msra.mxu0 0
        %435 = vmatprep.subr.bf16.mxu0 0
        %436 = vmatpush2.bf16.xpose.msra.mxu0 0
        %437 = vmatprep.subr.bf16.mxu0 0
        %438 = vmatpush2.bf16.xpose.msra.mxu0 0
        %439 = vmatprep.subr.bf16.mxu0 0
        %440 = vmatpush2.bf16.xpose.msra.mxu0 0
        %441 = vmatprep.subr.bf16.mxu0 0
        %442 = vmatpush2.bf16.xpose.msra.mxu0 0
        %443 = vmatprep.mubr.bf16.mxu0 0
        %444 = vmatmul.mubr.bf16.gmra.mxu0 %v406
        %v445 = vpop.f32.mrf.mxu0
        %v446 = vadd.f32 0.0, %v445
        %v447 = vpop.f32.mrf.mxu0
        %v448 = vpop.f32.mrf.mxu0
        %v449 = vpop.f32.mrf.mxu0
        %450 = vdwg.mxu0
        %v451 = vsel %vm283, %v446, -inf
        %452 = vmax.xlane.f32.xlu0 %v451
        %v453 = vpop.xlane.xlu0 %452
        %v454 = vsub.f32 %v446, %v453
        %v455 = vmul.f32 %v454, 1.442695
        %v456 = vpow.pop %v455
        %v457 = vsel %vm283, %v456, 0.0
        %458 = vadd.xlane.f32.xlu0 %v457
        %v459 = vpop.xlane.xlu0 %458
        %v460 = vrcp.pop %v459
        %v461 = vmul.f32 %v456, %v460
        %v462 = vpack.c.bf16 %v461, %v461
        %v464 = vunpack.c.l.b16 %v394
        %v465 = vpack.c.b16 %v464, %v464
        %466 = vrot.lane.b32.xlu0 %v465, 120
        %v467 = vpop.permute.xlu0 %466
        %v469 = vsel %vm283, %v462, 0
        %v472 = vsel %vm345, %v467, 0
        %474 = vmatprep.subr.bf16.mxu0 0
        %475 = vmatpush1.bf16.msra.mxu0 0
        %476 = vmatprep.subr.bf16.mxu0 0
        %477 = vmatpush1.bf16.msra.mxu0 0
        %478 = vmatprep.subr.bf16.mxu0 0
        %479 = vmatpush1.bf16.msra.mxu0 0
        %480 = vmatprep.subr.bf16.mxu0 0
        %481 = vmatpush1.bf16.msra.mxu0 0
        %482 = vmatprep.subr.bf16.mxu0 0
        %483 = vmatpush1.bf16.msra.mxu0 0
        %484 = vmatprep.subr.bf16.mxu0 0
        %485 = vmatpush1.bf16.msra.mxu0 0
        %486 = vmatprep.subr.bf16.mxu0 0
        %487 = vmatpush1.bf16.msra.mxu0 0
        %488 = vmatprep.subr.bf16.mxu0 0
        %489 = vmatpush1.bf16.msra.mxu0 %v472
        %490 = vmatprep.subr.bf16.mxu0 0
        %491 = vmatpush2.bf16.msra.mxu0 0
        %492 = vmatprep.subr.bf16.mxu0 0
        %493 = vmatpush2.bf16.msra.mxu0 0
        %494 = vmatprep.subr.bf16.mxu0 0
        %495 = vmatpush2.bf16.msra.mxu0 0
        %496 = vmatprep.subr.bf16.mxu0 0
        %497 = vmatpush2.bf16.msra.mxu0 0
        %498 = vmatprep.subr.bf16.mxu0 0
        %499 = vmatpush2.bf16.msra.mxu0 0
        %500 = vmatprep.subr.bf16.mxu0 0
        %501 = vmatpush2.bf16.msra.mxu0 0
        %502 = vmatprep.subr.bf16.mxu0 0
        %503 = vmatpush2.bf16.msra.mxu0 0
        %504 = vmatprep.subr.bf16.mxu0 0
        %505 = vmatpush2.bf16.msra.mxu0 0
        %506 = vmatprep.mubr.bf16.mxu0 0
        %507 = vmatmul.mubr.bf16.gmra.mxu0 %v469
        %v508 = vpop.f32.mrf.mxu0
        %v509 = vadd.f32 0.0, %v508
        %v510 = vpop.f32.mrf.mxu0
        %v511 = vpop.f32.mrf.mxu0
        %v512 = vpop.f32.mrf.mxu0
        %513 = vdwg.mxu0
        %v514 = vpack.c.bf16 %v509, %v509
        %v516 = vunpack.c.l.b16 %v514
        %v517 = vpack.c.b16 %v516, %v516
        %518 = vrot.lane.b32.xlu0 %v517, 8
        %v519 = vpop.permute.xlu0 %518
        %vm521 = vcmask 126016
        %522 = vst.msk [vmem:[#allocation2] sm:$0xf] %vm521, %v519
        %v523 = vld [vmem:[%s270] sm:$0xf]
        %v524 = vld [vmem:[%s274] sm:$0xf]
        %v525 = vld [vmem:[%s278] sm:$0xf]
        %v527 = vunpack.c.l.b16 %v523
        %v528 = vpack.c.b16 %v527, %v527
        %529 = vrot.lane.b32.xlu0 %v528, 112
        %v530 = vpop.permute.xlu0 %529
        %v532 = vunpack.c.l.b16 %v524
        %v533 = vpack.c.b16 %v532, %v532
        %534 = vrot.lane.b32.xlu0 %v533, 112
        %v535 = vpop.permute.xlu0 %534
        %v537 = vsel %vm283, %v530, 0
        %v540 = vsel %vm283, %v535, 0
        %542 = vmatprep.subr.bf16.mxu0 0
        %543 = vmatpush1.bf16.xpose.msra.mxu0 0
        %544 = vmatprep.subr.bf16.mxu0 0
        %545 = vmatpush1.bf16.xpose.msra.mxu0 0
        %546 = vmatprep.subr.bf16.mxu0 0
        %547 = vmatpush1.bf16.xpose.msra.mxu0 0
        %548 = vmatprep.subr.bf16.mxu0 0
        %549 = vmatpush1.bf16.xpose.msra.mxu0 0
        %550 = vmatprep.subr.bf16.mxu0 0
        %551 = vmatpush1.bf16.xpose.msra.mxu0 0
        %552 = vmatprep.subr.bf16.mxu0 0
        %553 = vmatpush1.bf16.xpose.msra.mxu0 0
        %554 = vmatprep.subr.bf16.mxu0 0
        %555 = vmatpush1.bf16.xpose.msra.mxu0 0
        %556 = vmatprep.subr.bf16.mxu0 0
        %557 = vmatpush1.bf16.xpose.msra.mxu0 %v540
        %558 = vmatprep.subr.bf16.mxu0 0
        %559 = vmatpush2.bf16.xpose.msra.mxu0 0
        %560 = vmatprep.subr.bf16.mxu0 0
        %561 = vmatpush2.bf16.xpose.msra.mxu0 0
        %562 = vmatprep.subr.bf16.mxu0 0
        %563 = vmatpush2.bf16.xpose.msra.mxu0 0
        %564 = vmatprep.subr.bf16.mxu0 0
        %565 = vmatpush2.bf16.xpose.msra.mxu0 0
        %566 = vmatprep.subr.bf16.mxu0 0
        %567 = vmatpush2.bf16.xpose.msra.mxu0 0
        %568 = vmatprep.subr.bf16.mxu0 0
        %569 = vmatpush2.bf16.xpose.msra.mxu0 0
        %570 = vmatprep.subr.bf16.mxu0 0
        %571 = vmatpush2.bf16.xpose.msra.mxu0 0
        %572 = vmatprep.subr.bf16.mxu0 0
        %573 = vmatpush2.bf16.xpose.msra.mxu0 0
        %574 = vmatprep.mubr.bf16.mxu0 0
        %575 = vmatmul.mubr.bf16.gmra.mxu0 %v537
        %v576 = vpop.f32.mrf.mxu0
        %v577 = vadd.f32 0.0, %v576
        %v578 = vpop.f32.mrf.mxu0
        %v579 = vpop.f32.mrf.mxu0
        %v580 = vpop.f32.mrf.mxu0
        %581 = vdwg.mxu0
        %v582 = vsel %vm283, %v577, -inf
        %583 = vmax.xlane.f32.xlu0 %v582
        %v584 = vpop.xlane.xlu0 %583
        %v585 = vsub.f32 %v577, %v584
        %v586 = vmul.f32 %v585, 1.442695
        %v587 = vpow.pop %v586
        %v588 = vsel %vm283, %v587, 0.0
        %589 = vadd.xlane.f32.xlu0 %v588
        %v590 = vpop.xlane.xlu0 %589
        %v591 = vrcp.pop %v590
        %v592 = vmul.f32 %v587, %v591
        %v593 = vpack.c.bf16 %v592, %v592
        %v595 = vunpack.c.l.b16 %v525
        %v596 = vpack.c.b16 %v595, %v595
        %597 = vrot.lane.b32.xlu0 %v596, 112
        %v598 = vpop.permute.xlu0 %597
        %v600 = vsel %vm283, %v593, 0
        %v603 = vsel %vm345, %v598, 0
        %605 = vmatprep.subr.bf16.mxu0 0
        %606 = vmatpush1.bf16.msra.mxu0 0
        %607 = vmatprep.subr.bf16.mxu0 0
        %608 = vmatpush1.bf16.msra.mxu0 0
        %609 = vmatprep.subr.bf16.mxu0 0
        %610 = vmatpush1.bf16.msra.mxu0 0
        %611 = vmatprep.subr.bf16.mxu0 0
        %612 = vmatpush1.bf16.msra.mxu0 0
        %613 = vmatprep.subr.bf16.mxu0 0
        %614 = vmatpush1.bf16.msra.mxu0 0
        %615 = vmatprep.subr.bf16.mxu0 0
        %616 = vmatpush1.bf16.msra.mxu0 0
        %617 = vmatprep.subr.bf16.mxu0 0
        %618 = vmatpush1.bf16.msra.mxu0 0
        %619 = vmatprep.subr.bf16.mxu0 0
        %620 = vmatpush1.bf16.msra.mxu0 %v603
        %621 = vmatprep.subr.bf16.mxu0 0
        %622 = vmatpush2.bf16.msra.mxu0 0
        %623 = vmatprep.subr.bf16.mxu0 0
        %624 = vmatpush2.bf16.msra.mxu0 0
        %625 = vmatprep.subr.bf16.mxu0 0
        %626 = vmatpush2.bf16.msra.mxu0 0
        %627 = vmatprep.subr.bf16.mxu0 0
        %628 = vmatpush2.bf16.msra.mxu0 0
        %629 = vmatprep.subr.bf16.mxu0 0
        %630 = vmatpush2.bf16.msra.mxu0 0
        %631 = vmatprep.subr.bf16.mxu0 0
        %632 = vmatpush2.bf16.msra.mxu0 0
        %633 = vmatprep.subr.bf16.mxu0 0
        %634 = vmatpush2.bf16.msra.mxu0 0
        %635 = vmatprep.subr.bf16.mxu0 0
        %636 = vmatpush2.bf16.msra.mxu0 0
        %637 = vmatprep.mubr.bf16.mxu0 0
        %638 = vmatmul.mubr.bf16.gmra.mxu0 %v600
        %v639 = vpop.f32.mrf.mxu0
        %v640 = vadd.f32 0.0, %v639
        %v641 = vpop.f32.mrf.mxu0
        %v642 = vpop.f32.mrf.mxu0
        %v643 = vpop.f32.mrf.mxu0
        %644 = vdwg.mxu0
        %v645 = vpack.c.bf16 %v640, %v640
        %v647 = vunpack.c.l.b16 %v645
        %v648 = vpack.c.b16 %v647, %v647
        %649 = vrot.lane.b32.xlu0 %v648, 16
        %v650 = vpop.permute.xlu0 %649
        %vm652 = vcmask 191616
        %653 = vst.msk [vmem:[#allocation2] sm:$0xf] %vm652, %v650
        %v654 = vld [vmem:[%s270] sm:$0xf]
        %v655 = vld [vmem:[%s274] sm:$0xf]
        %v656 = vld [vmem:[%s278] sm:$0xf]
        %v658 = vunpack.c.l.b16 %v654
        %v659 = vpack.c.b16 %v658, %v658
        %660 = vrot.lane.b32.xlu0 %v659, 104
        %v661 = vpop.permute.xlu0 %660
        %v663 = vunpack.c.l.b16 %v655
        %v664 = vpack.c.b16 %v663, %v663
        %665 = vrot.lane.b32.xlu0 %v664, 104
        %v666 = vpop.permute.xlu0 %665
        %v668 = vsel %vm283, %v661, 0
        %v671 = vsel %vm283, %v666, 0
        %673 = vmatprep.subr.bf16.mxu0 0
        %674 = vmatpush1.bf16.xpose.msra.mxu0 0
        %675 = vmatprep.subr.bf16.mxu0 0
        %676 = vmatpush1.bf16.xpose.msra.mxu0 0
        %677 = vmatprep.subr.bf16.mxu0 0
        %678 = vmatpush1.bf16.xpose.msra.mxu0 0
        %679 = vmatprep.subr.bf16.mxu0 0
        %680 = vmatpush1.bf16.xpose.msra.mxu0 0
        %681 = vmatprep.subr.bf16.mxu0 0
        %682 = vmatpush1.bf16.xpose.msra.mxu0 0
        %683 = vmatprep.subr.bf16.mxu0 0
        %684 = vmatpush1.bf16.xpose.msra.mxu0 0
        %685 = vmatprep.subr.bf16.mxu0 0
        %686 = vmatpush1.bf16.xpose.msra.mxu0 0
        %687 = vmatprep.subr.bf16.mxu0 0
        %688 = vmatpush1.bf16.xpose.msra.mxu0 %v671
        %689 = vmatprep.subr.bf16.mxu0 0
        %690 = vmatpush2.bf16.xpose.msra.mxu0 0
        %691 = vmatprep.subr.bf16.mxu0 0
        %692 = vmatpush2.bf16.xpose.msra.mxu0 0
        %693 = vmatprep.subr.bf16.mxu0 0
        %694 = vmatpush2.bf16.xpose.msra.mxu0 0
        %695 = vmatprep.subr.bf16.mxu0 0
        %696 = vmatpush2.bf16.xpose.msra.mxu0 0
        %697 = vmatprep.subr.bf16.mxu0 0
        %698 = vmatpush2.bf16.xpose.msra.mxu0 0
        %699 = vmatprep.subr.bf16.mxu0 0
        %700 = vmatpush2.bf16.xpose.msra.mxu0 0
        %701 = vmatprep.subr.bf16.mxu0 0
        %702 = vmatpush2.bf16.xpose.msra.mxu0 0
        %703 = vmatprep.subr.bf16.mxu0 0
        %704 = vmatpush2.bf16.xpose.msra.mxu0 0
        %705 = vmatprep.mubr.bf16.mxu0 0
        %706 = vmatmul.mubr.bf16.gmra.mxu0 %v668
        %v707 = vpop.f32.mrf.mxu0
        %v708 = vadd.f32 0.0, %v707
        %v709 = vpop.f32.mrf.mxu0
        %v710 = vpop.f32.mrf.mxu0
        %v711 = vpop.f32.mrf.mxu0
        %712 = vdwg.mxu0
        %v713 = vsel %vm283, %v708, -inf
        %714 = vmax.xlane.f32.xlu0 %v713
        %v715 = vpop.xlane.xlu0 %714
        %v716 = vsub.f32 %v708, %v715
        %v717 = vmul.f32 %v716, 1.442695
        %v718 = vpow.pop %v717
        %v719 = vsel %vm283, %v718, 0.0
        %720 = vadd.xlane.f32.xlu0 %v719
        %v721 = vpop.xlane.xlu0 %720
        %v722 = vrcp.pop %v721
        %v723 = vmul.f32 %v718, %v722
        %v724 = vpack.c.bf16 %v723, %v723
        %v726 = vunpack.c.l.b16 %v656
        %v727 = vpack.c.b16 %v726, %v726
        %728 = vrot.lane.b32.xlu0 %v727, 104
        %v729 = vpop.permute.xlu0 %728
        %v731 = vsel %vm283, %v724, 0
        %v734 = vsel %vm345, %v729, 0
        %736 = vmatprep.subr.bf16.mxu0 0
        %737 = vmatpush1.bf16.msra.mxu0 0
        %738 = vmatprep.subr.bf16.mxu0 0
        %739 = vmatpush1.bf16.msra.mxu0 0
        %740 = vmatprep.subr.bf16.mxu0 0
        %741 = vmatpush1.bf16.msra.mxu0 0
        %742 = vmatprep.subr.bf16.mxu0 0
        %743 = vmatpush1.bf16.msra.mxu0 0
        %744 = vmatprep.subr.bf16.mxu0 0
        %745 = vmatpush1.bf16.msra.mxu0 0
        %746 = vmatprep.subr.bf16.mxu0 0
        %747 = vmatpush1.bf16.msra.mxu0 0
        %748 = vmatprep.subr.bf16.mxu0 0
        %749 = vmatpush1.bf16.msra.mxu0 0
        %750 = vmatprep.subr.bf16.mxu0 0
        %751 = vmatpush1.bf16.msra.mxu0 %v734
        %752 = vmatprep.subr.bf16.mxu0 0
        %753 = vmatpush2.bf16.msra.mxu0 0
        %754 = vmatprep.subr.bf16.mxu0 0
        %755 = vmatpush2.bf16.msra.mxu0 0
        %756 = vmatprep.subr.bf16.mxu0 0
        %757 = vmatpush2.bf16.msra.mxu0 0
        %758 = vmatprep.subr.bf16.mxu0 0
        %759 = vmatpush2.bf16.msra.mxu0 0
        %760 = vmatprep.subr.bf16.mxu0 0
        %761 = vmatpush2.bf16.msra.mxu0 0
        %762 = vmatprep.subr.bf16.mxu0 0
        %763 = vmatpush2.bf16.msra.mxu0 0
        %764 = vmatprep.subr.bf16.mxu0 0
        %765 = vmatpush2.bf16.msra.mxu0 0
        %766 = vmatprep.subr.bf16.mxu0 0
        %767 = vmatpush2.bf16.msra.mxu0 0
        %768 = vmatprep.mubr.bf16.mxu0 0
        %769 = vmatmul.mubr.bf16.gmra.mxu0 %v731
        %v770 = vpop.f32.mrf.mxu0
        %v771 = vadd.f32 0.0, %v770
        %v772 = vpop.f32.mrf.mxu0
        %v773 = vpop.f32.mrf.mxu0
        %v774 = vpop.f32.mrf.mxu0
        %775 = vdwg.mxu0
        %v776 = vpack.c.bf16 %v771, %v771
        %v778 = vunpack.c.l.b16 %v776
        %v779 = vpack.c.b16 %v778, %v778
        %780 = vrot.lane.b32.xlu0 %v779, 24
        %v781 = vpop.permute.xlu0 %780
        %vm783 = vcmask 257216
        %784 = vst.msk [vmem:[#allocation2] sm:$0xf] %vm783, %v781
        %v785 = vld [vmem:[#allocation2] sm:$0xf]
        %v786 = vld [vmem:[%s3] sm:$0xf]
        %v787 = vld [vmem:[%s3 + $0x4] sm:$0xf]
        %v788 = vld [vmem:[%s3 + $0x8] sm:$0xf]
        %v789 = vld [vmem:[%s3 + $0xc] sm:$0xf]
        %v790 = vld [vmem:[%s4] sm:$0x1]
        %v792 = vlaneseq
        %v793 = vshrl.u32 %v792, 7
        %v794 = vsub.s32 0, %v793
        %v795 = vrot.slane %v790, %v794
        %v801 = vunpack.c.l.b16 %v786
        %v802 = vunpack.c.l.b16 %v787
        %v803 = vunpack.c.l.b16 %v788
        %v804 = vunpack.c.l.b16 %v789
        %v805 = vpack.c.b16 %v802, %v801
        %v806 = vpack.c.b16 %v804, %v803
        %vm809 = vcmask 261120
        %v811 = vsel %vm809, %v785, 0
        %813 = vmatprep.subr.bf16.mxu0 0
        %814 = vmatpush1.bf16.msra.mxu0 0
        %815 = vmatprep.subr.bf16.mxu0 0
        %816 = vmatpush1.bf16.msra.mxu0 0
        %817 = vmatprep.subr.bf16.mxu0 0
        %818 = vmatpush1.bf16.msra.mxu0 0
        %819 = vmatprep.subr.bf16.mxu0 0
        %820 = vmatpush1.bf16.msra.mxu0 0
        %821 = vmatprep.subr.bf16.mxu0 0
        %822 = vmatpush1.bf16.msra.mxu0 0
        %823 = vmatprep.subr.bf16.mxu0 0
        %824 = vmatpush1.bf16.msra.mxu0 0
        %825 = vmatprep.subr.bf16.mxu0 0
        %826 = vmatpush1.bf16.msra.mxu0 %v806
        %827 = vmatprep.subr.bf16.mxu0 0
        %828 = vmatpush1.bf16.msra.mxu0 %v805
        %829 = vmatprep.subr.bf16.mxu0 0
        %830 = vmatpush2.bf16.msra.mxu0 0
        %831 = vmatprep.subr.bf16.mxu0 0
        %832 = vmatpush2.bf16.msra.mxu0 0
        %833 = vmatprep.subr.bf16.mxu0 0
        %834 = vmatpush2.bf16.msra.mxu0 0
        %835 = vmatprep.subr.bf16.mxu0 0
        %836 = vmatpush2.bf16.msra.mxu0 0
        %837 = vmatprep.subr.bf16.mxu0 0
        %838 = vmatpush2.bf16.msra.mxu0 0
        %839 = vmatprep.subr.bf16.mxu0 0
        %840 = vmatpush2.bf16.msra.mxu0 0
        %841 = vmatprep.subr.bf16.mxu0 0
        %842 = vmatpush2.bf16.msra.mxu0 0
        %843 = vmatprep.subr.bf16.mxu0 0
        %844 = vmatpush2.bf16.msra.mxu0 0
        %845 = vmatprep.mubr.bf16.mxu0 0
        %846 = vmatmul.mubr.bf16.gmra.mxu0 %v811
        %v847 = vpop.f32.mrf.mxu0
        %v848 = vadd.f32 %v795, %v847
        %v849 = vpop.f32.mrf.mxu0
        %v850 = vpop.f32.mrf.mxu0
        %v851 = vpop.f32.mrf.mxu0
        %852 = vdwg.mxu0
        %853 = vst.msk [vmem:[%s263] sm:$0xff] %vm809, %v848
        %s854 = sand.u32 %s163, 1
        %s855 = scalar_lea.sflag [#allocation4], %s854
        %s856 = sand.u32 %s163, 1
        %s857 = smul.addr %s856, 8
        %s858 = scalar_lea.vmem [#allocation3], %s857
        // Predicated region
        $region41: #{multi_head_attention.1} parent=39 // pred_check
          %p859 = pneg %p173
        $region42: #{multi_head_attention.1} parent=39 // pred_check_branch
          %861 = sbr.rel (%p859) target = $region44
        $region43: #{multi_head_attention.1} parent=39 // pred_region
          %s863 = ssub.s32 128, 128
          %864 = vsyncadd %s855, %s863
          %s865 = sadd.s32 %s24, %s23
          %s866 = smul.addr %s865, 128
          %s867 = scalar_lea.hbm %s5, %s866
          %s869 = sshll.u32 %s858, 4
          %s870 = int_to_ptr.vmem [resolvable:$true] %s869
          %872 = dma.vmem_to_hbm [thread:$0]  %s870, 128, %s867, %s855
        $region44: #{multi_head_attention.1} parent=39 // pred_fallthru
          _
      $region40: #{multi_head_attention.1} parent=5 // pred_fallthru
        _
      %p873 = scmp.le.s32.totalorder 2, %s14
      // Predicated region
      $region45: #{multi_head_attention.1} parent=5 // pred_check
        %p874 = pneg %p873
      $region46: #{multi_head_attention.1} parent=5 // pred_check_branch
        %876 = sbr.rel (%p874) target = $region48
      $region47: #{multi_head_attention.1} parent=5 // pred_region
        %s877 = ssub.s32 %s14, 2
        // Predicated region
        $region49: #{multi_head_attention.1} parent=47 // pred_check
          %p878 = pneg %p179
        $region50: #{multi_head_attention.1} parent=47 // pred_check_branch
          %880 = sbr.rel (%p878) target = $region52
        $region51: #{multi_head_attention.1} parent=47 // pred_region
          %s881 = sand.u32 %s164, 1
          %s882 = scalar_lea.sflag [#allocation4], %s881
          %s883 = sand.u32 %s164, 1
          %s884 = smul.addr %s883, 8
          %s885 = scalar_lea.vmem [#allocation3], %s884
          %886 = dma.done %s882, 128
        $region52: #{multi_head_attention.1} parent=47 // pred_fallthru
          _
      $region48: #{multi_head_attention.1} parent=5 // pred_fallthru
        _
    $region6: #{multi_head_attention.1} parent=1 // loop_footer
      %s18 = sadd.s32 1, %s14
    $region7: #{multi_head_attention.1} parent=1 // loop_footer_branch
      %13 = sbr.rel target = $region3
    $region8: #{multi_head_attention.1} parent=1 // loop_exit
      _
    %887 = vsyncpa [#allocation4], 1
    %s888 = scalar_lea.sflag [#allocation4], 1
    %889 = vsyncpa %s888, 1

</llo_original>
